<compile_context>
chip_gen: v7x
topology: tpu7x:2x2x1
jax: 0.10.0
libtpu: 0.0.40
codegen_flags: <defaults>
</compile_context>

<pallas_src>
import functools

import jax
import jax.numpy as jnp
from jax.experimental import pallas as pl
from jax.experimental.pallas import tpu as pltpu

_BN_EPS = 1e-5
_LANE = 128


def _round_up(n, m):
    return ((n + m - 1) // m) * m


def _fused_mlp_kernel(num_layers, x_ref, *refs):
    """Fused (Linear -> BatchNorm1d(batch stats) -> SiLU) x num_layers.

    refs = (w_0, gamma_0, beta_0, ..., w_{L-1}, gamma_{L-1}, beta_{L-1}, o_ref)
      x_ref:    (N, Cin_pad_0)            f32 VMEM
      w_i:      (Cin_pad_i, Cout_pad_i)   bf16 VMEM (pre-transposed, zero-padded)
      gamma_i:  (1, Cout_pad_i)           f32 VMEM
      beta_i:   (1, Cout_pad_i)           f32 VMEM
      o_ref:    (N, Cout_pad_{L-1})       f32 VMEM

    Zero-padded feature columns stay exactly zero through every layer
    (y=0 -> diff=0 -> y_bn=0 -> SiLU(0)=0), so padding never pollutes results.
    """
    o_ref = refs[3 * num_layers]
    h = x_ref[...]
    for i in range(num_layers):
        w = refs[3 * i][...]
        gamma = refs[3 * i + 1][...]
        beta = refs[3 * i + 2][...]

        # Linear on the MXU, bf16 operands, f32 accumulation.
        # (No bias: it is mathematically dead under train-mode BatchNorm.)
        y = jnp.dot(h.astype(jnp.bfloat16), w, preferred_element_type=jnp.float32)

        # BatchNorm1d training-mode forward: batch mean, biased batch variance.
        mean = jnp.mean(y, axis=0, keepdims=True)
        diff = y - mean
        var = jnp.mean(diff * diff, axis=0, keepdims=True)
        # Fold gamma into the per-feature scale -> one fewer (N, Cout) multiply.
        scale = gamma * jax.lax.rsqrt(var + _BN_EPS)
        y_bn = diff * scale + beta

        # SiLU: z * sigmoid(z). Dropout(p=0) == Identity (omitted).
        h = y_bn * jax.nn.sigmoid(y_bn)

    o_ref[...] = h.astype(o_ref.dtype)


@jax.jit
def mlp_stack_forward(x, params):
    """MLPStack forward.

    x: (N, layers[0]) f32.
    params: list of (w, b, gamma, beta) with torch-like shapes
            w: (Cin, Cout) (= Linear.weight.T), b: (1, Cout) (unused by the
            kernel - cancelled by train-mode BN), gamma/beta: (1, Cout).
    """
    n, c_in0 = x.shape
    num_layers = len(params)

    # Pad the input features to a lane-dense width.
    ci_p0 = _round_up(c_in0, _LANE)
    x_p = jnp.zeros((n, ci_p0), jnp.float32).at[:, :c_in0].set(x)

    # Pad / cast parameters for the kernel (bias intentionally dropped).
    flat_inputs = []
    for (w, _b, gamma, beta) in params:
        c_in, c_out = w.shape
        ci_p, co_p = _round_up(c_in, _LANE), _round_up(c_out, _LANE)
        w_p = (jnp.zeros((ci_p, co_p), jnp.float32)
               .at[:c_in, :c_out].set(w).astype(jnp.bfloat16))
        g_p = jnp.zeros((1, co_p), jnp.float32).at[:, :c_out].set(gamma)
        be_p = jnp.zeros((1, co_p), jnp.float32).at[:, :c_out].set(beta)
        flat_inputs.extend([w_p, g_p, be_p])

    c_out_last = params[-1][0].shape[1]
    co_last_p = _round_up(c_out_last, _LANE)

    out_p = pl.pallas_call(
        functools.partial(_fused_mlp_kernel, num_layers),
        out_shape=jax.ShapeDtypeStruct((n, co_last_p), jnp.float32),
        # Tiny problem: whole arrays live in VMEM as single blocks (no grid).
        in_specs=[pl.BlockSpec(memory_space=pltpu.VMEM)] * (1 + 3 * num_layers),
        out_specs=pl.BlockSpec(memory_space=pltpu.VMEM),
    )(x_p, *flat_inputs)

    return out_p[:, :c_out_last]


def init_mlp_stack_params(key, layers):
    """Deterministic init mimicking torch defaults (uniform bounds 1/sqrt(fan_in)).

    The Linear bias is generated (for fidelity with torch and for the reference
    check) but is NOT consumed by the fused kernel: under train-mode BatchNorm
    the bias shifts y and the batch mean identically and cancels exactly.
    """
    params = []
    for i in range(1, len(layers)):
        c_in, c_out = layers[i - 1], layers[i]
        key, kw, kb = jax.random.split(key, 3)
        bound = 1.0 / (c_in ** 0.5)
        w = jax.random.uniform(kw, (c_in, c_out), jnp.float32, -bound, bound)
        b = jax.random.uniform(kb, (1, c_out), jnp.float32, -bound, bound)
        gamma = jnp.ones((1, c_out), jnp.float32)   # BatchNorm1d weight init
        beta = jnp.zeros((1, c_out), jnp.float32)   # BatchNorm1d bias init
        params.append((w, b, gamma, beta))
    return params


def _reference_forward(x, params):
    """Pure-JAX reference with torch semantics (bias included), using the same
    bf16-operand / f32-accumulate matmul precision as the kernel so the
    comparison isolates kernel correctness."""
    h = x
    for (w, b, gamma, beta) in params:
        y = jnp.dot(h.astype(jnp.bfloat16), w.astype(jnp.bfloat16),
                    preferred_element_type=jnp.float32) + b
        mean = jnp.mean(y, axis=0, keepdims=True)
        var = jnp.mean((y - mean) ** 2, axis=0, keepdims=True)
        y = (y - mean) * jax.lax.rsqrt(var + _BN_EPS) * gamma + beta
        h = y * jax.nn.sigmoid(y)
    return h


if __name__ == "__main__":
    # MLPStack(layers=[16, 32, 64, 8]) on a batch of 8 rows.
    layers = [16, 32, 64, 8]
    batch = 8

    key = jax.random.PRNGKey(0)
    key, kx = jax.random.split(key)
    x = jax.random.normal(kx, (batch, layers[0]), jnp.float32)

    params = init_mlp_stack_params(key, layers)

    out = jax.block_until_ready(mlp_stack_forward(x, params))
    ref = _reference_forward(x, params)

    assert out.shape == (batch, layers[-1])
    assert jnp.allclose(out, ref, atol=1e-4, rtol=1e-4), float(
        jnp.max(jnp.abs(out - ref)))

    print("KERNEL_OK")
</pallas_src>

<mosaic_0001>
module attributes {stable_mosaic.version = 11 : i64} {
  func.func @_fused_mlp_kernel(%arg0: memref<8x128xf32, #tpu.memory_space<vmem>>, %arg1: memref<128x128xbf16, #tpu.memory_space<vmem>>, %arg2: memref<1x128xf32, #tpu.memory_space<vmem>>, %arg3: memref<1x128xf32, #tpu.memory_space<vmem>>, %arg4: memref<128x128xbf16, #tpu.memory_space<vmem>>, %arg5: memref<1x128xf32, #tpu.memory_space<vmem>>, %arg6: memref<1x128xf32, #tpu.memory_space<vmem>>, %arg7: memref<128x128xbf16, #tpu.memory_space<vmem>>, %arg8: memref<1x128xf32, #tpu.memory_space<vmem>>, %arg9: memref<1x128xf32, #tpu.memory_space<vmem>>, %arg10: memref<8x128xf32, #tpu.memory_space<vmem>>) attributes {dimension_semantics = [], scalar_prefetch = 0 : i64, scratch_operands = 0 : i64, tpu.core_type = #tpu.core_type<tc>} {
    %c0 = arith.constant 0 : index
    %c0_0 = arith.constant 0 : index
    %0 = vector.load %arg0[%c0, %c0_0] : memref<8x128xf32, #tpu.memory_space<vmem>>, vector<8x128xf32>
    %c0_1 = arith.constant 0 : index
    %c0_2 = arith.constant 0 : index
    %1 = vector.load %arg1[%c0_1, %c0_2] : memref<128x128xbf16, #tpu.memory_space<vmem>>, vector<128x128xbf16>
    %c0_3 = arith.constant 0 : index
    %c0_4 = arith.constant 0 : index
    %2 = vector.load %arg2[%c0_3, %c0_4] : memref<1x128xf32, #tpu.memory_space<vmem>>, vector<1x128xf32>
    %c0_5 = arith.constant 0 : index
    %c0_6 = arith.constant 0 : index
    %3 = vector.load %arg3[%c0_5, %c0_6] : memref<1x128xf32, #tpu.memory_space<vmem>>, vector<1x128xf32>
    %4 = arith.truncf %0 : vector<8x128xf32> to vector<8x128xbf16>
    %cst = arith.constant dense<0.000000e+00> : vector<8x128xf32>
    %5 = tpu.matmul %4, %1, %cst {dimension_numbers = #tpu.dot_dimension_numbers<[1], [0], [0], [1], [0, 0, 1, 1], [], []>} : vector<8x128xbf16>, vector<128x128xbf16>, vector<8x128xf32> -> vector<8x128xf32>
    %cst_7 = arith.constant dense<0.000000e+00> : vector<128xf32>
    %6 = vector.multi_reduction <add>, %5, %cst_7 [0] : vector<8x128xf32> to vector<128xf32>
    %7 = vector.shape_cast %6 : vector<128xf32> to vector<1x128xf32>
    %cst_8 = arith.constant 8.000000e+00 : f32
    %8 = vector.broadcast %cst_8 : f32 to vector<1x128xf32>
    %9 = arith.divf %7, %8 : vector<1x128xf32>
    %10 = vector.broadcast %9 : vector<1x128xf32> to vector<8x128xf32>
    %11 = arith.subf %5, %10 : vector<8x128xf32>
    %12 = arith.mulf %11, %11 : vector<8x128xf32>
    %cst_9 = arith.constant dense<0.000000e+00> : vector<128xf32>
    %13 = vector.multi_reduction <add>, %12, %cst_9 [0] : vector<8x128xf32> to vector<128xf32>
    %14 = vector.shape_cast %13 : vector<128xf32> to vector<1x128xf32>
    %cst_10 = arith.constant 8.000000e+00 : f32
    %15 = vector.broadcast %cst_10 : f32 to vector<1x128xf32>
    %16 = arith.divf %14, %15 : vector<1x128xf32>
    %cst_11 = arith.constant 9.99999974E-6 : f32
    %17 = vector.broadcast %cst_11 : f32 to vector<1x128xf32>
    %18 = arith.addf %16, %17 : vector<1x128xf32>
    %19 = math.rsqrt %18 : vector<1x128xf32>
    %20 = arith.mulf %2, %19 : vector<1x128xf32>
    %21 = vector.broadcast %20 : vector<1x128xf32> to vector<8x128xf32>
    %22 = arith.mulf %11, %21 : vector<8x128xf32>
    %23 = vector.broadcast %3 : vector<1x128xf32> to vector<8x128xf32>
    %24 = arith.addf %22, %23 : vector<8x128xf32>
    %25 = arith.negf %24 : vector<8x128xf32>
    %26 = math.exp %25 : vector<8x128xf32>
    %cst_12 = arith.constant 1.000000e+00 : f32
    %27 = vector.broadcast %cst_12 : f32 to vector<8x128xf32>
    %28 = arith.addf %27, %26 : vector<8x128xf32>
    %29 = arith.divf %27, %28 : vector<8x128xf32>
    %30 = arith.mulf %24, %29 : vector<8x128xf32>
    %c0_13 = arith.constant 0 : index
    %c0_14 = arith.constant 0 : index
    %31 = vector.load %arg4[%c0_13, %c0_14] : memref<128x128xbf16, #tpu.memory_space<vmem>>, vector<128x128xbf16>
    %c0_15 = arith.constant 0 : index
    %c0_16 = arith.constant 0 : index
    %32 = vector.load %arg5[%c0_15, %c0_16] : memref<1x128xf32, #tpu.memory_space<vmem>>, vector<1x128xf32>
    %c0_17 = arith.constant 0 : index
    %c0_18 = arith.constant 0 : index
    %33 = vector.load %arg6[%c0_17, %c0_18] : memref<1x128xf32, #tpu.memory_space<vmem>>, vector<1x128xf32>
    %34 = arith.truncf %30 : vector<8x128xf32> to vector<8x128xbf16>
    %cst_19 = arith.constant dense<0.000000e+00> : vector<8x128xf32>
    %35 = tpu.matmul %34, %31, %cst_19 {dimension_numbers = #tpu.dot_dimension_numbers<[1], [0], [0], [1], [0, 0, 1, 1], [], []>} : vector<8x128xbf16>, vector<128x128xbf16>, vector<8x128xf32> -> vector<8x128xf32>
    %cst_20 = arith.constant dense<0.000000e+00> : vector<128xf32>
    %36 = vector.multi_reduction <add>, %35, %cst_20 [0] : vector<8x128xf32> to vector<128xf32>
    %37 = vector.shape_cast %36 : vector<128xf32> to vector<1x128xf32>
    %cst_21 = arith.constant 8.000000e+00 : f32
    %38 = vector.broadcast %cst_21 : f32 to vector<1x128xf32>
    %39 = arith.divf %37, %38 : vector<1x128xf32>
    %40 = vector.broadcast %39 : vector<1x128xf32> to vector<8x128xf32>
    %41 = arith.subf %35, %40 : vector<8x128xf32>
    %42 = arith.mulf %41, %41 : vector<8x128xf32>
    %cst_22 = arith.constant dense<0.000000e+00> : vector<128xf32>
    %43 = vector.multi_reduction <add>, %42, %cst_22 [0] : vector<8x128xf32> to vector<128xf32>
    %44 = vector.shape_cast %43 : vector<128xf32> to vector<1x128xf32>
    %cst_23 = arith.constant 8.000000e+00 : f32
    %45 = vector.broadcast %cst_23 : f32 to vector<1x128xf32>
    %46 = arith.divf %44, %45 : vector<1x128xf32>
    %cst_24 = arith.constant 9.99999974E-6 : f32
    %47 = vector.broadcast %cst_24 : f32 to vector<1x128xf32>
    %48 = arith.addf %46, %47 : vector<1x128xf32>
    %49 = math.rsqrt %48 : vector<1x128xf32>
    %50 = arith.mulf %32, %49 : vector<1x128xf32>
    %51 = vector.broadcast %50 : vector<1x128xf32> to vector<8x128xf32>
    %52 = arith.mulf %41, %51 : vector<8x128xf32>
    %53 = vector.broadcast %33 : vector<1x128xf32> to vector<8x128xf32>
    %54 = arith.addf %52, %53 : vector<8x128xf32>
    %55 = arith.negf %54 : vector<8x128xf32>
    %56 = math.exp %55 : vector<8x128xf32>
    %cst_25 = arith.constant 1.000000e+00 : f32
    %57 = vector.broadcast %cst_25 : f32 to vector<8x128xf32>
    %58 = arith.addf %57, %56 : vector<8x128xf32>
    %59 = arith.divf %57, %58 : vector<8x128xf32>
    %60 = arith.mulf %54, %59 : vector<8x128xf32>
    %c0_26 = arith.constant 0 : index
    %c0_27 = arith.constant 0 : index
    %61 = vector.load %arg7[%c0_26, %c0_27] : memref<128x128xbf16, #tpu.memory_space<vmem>>, vector<128x128xbf16>
    %c0_28 = arith.constant 0 : index
    %c0_29 = arith.constant 0 : index
    %62 = vector.load %arg8[%c0_28, %c0_29] : memref<1x128xf32, #tpu.memory_space<vmem>>, vector<1x128xf32>
    %c0_30 = arith.constant 0 : index
    %c0_31 = arith.constant 0 : index
    %63 = vector.load %arg9[%c0_30, %c0_31] : memref<1x128xf32, #tpu.memory_space<vmem>>, vector<1x128xf32>
    %64 = arith.truncf %60 : vector<8x128xf32> to vector<8x128xbf16>
    %cst_32 = arith.constant dense<0.000000e+00> : vector<8x128xf32>
    %65 = tpu.matmul %64, %61, %cst_32 {dimension_numbers = #tpu.dot_dimension_numbers<[1], [0], [0], [1], [0, 0, 1, 1], [], []>} : vector<8x128xbf16>, vector<128x128xbf16>, vector<8x128xf32> -> vector<8x128xf32>
    %cst_33 = arith.constant dense<0.000000e+00> : vector<128xf32>
    %66 = vector.multi_reduction <add>, %65, %cst_33 [0] : vector<8x128xf32> to vector<128xf32>
    %67 = vector.shape_cast %66 : vector<128xf32> to vector<1x128xf32>
    %cst_34 = arith.constant 8.000000e+00 : f32
    %68 = vector.broadcast %cst_34 : f32 to vector<1x128xf32>
    %69 = arith.divf %67, %68 : vector<1x128xf32>
    %70 = vector.broadcast %69 : vector<1x128xf32> to vector<8x128xf32>
    %71 = arith.subf %65, %70 : vector<8x128xf32>
    %72 = arith.mulf %71, %71 : vector<8x128xf32>
    %cst_35 = arith.constant dense<0.000000e+00> : vector<128xf32>
    %73 = vector.multi_reduction <add>, %72, %cst_35 [0] : vector<8x128xf32> to vector<128xf32>
    %74 = vector.shape_cast %73 : vector<128xf32> to vector<1x128xf32>
    %cst_36 = arith.constant 8.000000e+00 : f32
    %75 = vector.broadcast %cst_36 : f32 to vector<1x128xf32>
    %76 = arith.divf %74, %75 : vector<1x128xf32>
    %cst_37 = arith.constant 9.99999974E-6 : f32
    %77 = vector.broadcast %cst_37 : f32 to vector<1x128xf32>
    %78 = arith.addf %76, %77 : vector<1x128xf32>
    %79 = math.rsqrt %78 : vector<1x128xf32>
    %80 = arith.mulf %62, %79 : vector<1x128xf32>
    %81 = vector.broadcast %80 : vector<1x128xf32> to vector<8x128xf32>
    %82 = arith.mulf %71, %81 : vector<8x128xf32>
    %83 = vector.broadcast %63 : vector<1x128xf32> to vector<8x128xf32>
    %84 = arith.addf %82, %83 : vector<8x128xf32>
    %85 = arith.negf %84 : vector<8x128xf32>
    %86 = math.exp %85 : vector<8x128xf32>
    %cst_38 = arith.constant 1.000000e+00 : f32
    %87 = vector.broadcast %cst_38 : f32 to vector<8x128xf32>
    %88 = arith.addf %87, %86 : vector<8x128xf32>
    %89 = arith.divf %87, %88 : vector<8x128xf32>
    %90 = arith.mulf %84, %89 : vector<8x128xf32>
    %c0_39 = arith.constant 0 : index
    %c0_40 = arith.constant 0 : index
    %91 = vector.load %arg10[%c0_39, %c0_40] : memref<8x128xf32, #tpu.memory_space<vmem>>, vector<8x128xf32>
    tpu.vector_store %arg10[%c0_39, %c0_40], %90 {strides = array<i32>} : memref<8x128xf32, #tpu.memory_space<vmem>>, vector<8x128xf32>,
    return
  }
}

</mosaic_0001>

<llo_original>
// kernel: mlp_stack_forward.1
$region0: #{mlp_stack_forward.1}
  #allocation0 [shape = 'u32[]', space=smem, size = 0x4, offset = 0x4, fixed_abs, tag = 'smem constant byte address 0x4 - core index']
  #allocation1 [shape = 'u32[144,128]{1,0:T(1,128)}', space=vmem, size = 0x12000, scoped, tag = 'internal scratch']
  %s0 = inlined_call_operand.vmem [shape: f32[8,128], index: 0, kind: input, shape index: {}]
  %s1 = inlined_call_operand.vmem [shape: bf16[128,128], index: 1, kind: input, shape index: {}]
  %s2 = inlined_call_operand.vmem [shape: f32[1,128], index: 2, kind: input, shape index: {}]
  %s3 = inlined_call_operand.vmem [shape: f32[1,128], index: 3, kind: input, shape index: {}]
  %s4 = inlined_call_operand.vmem [shape: bf16[128,128], index: 4, kind: input, shape index: {}]
  %s5 = inlined_call_operand.vmem [shape: f32[1,128], index: 5, kind: input, shape index: {}]
  %s6 = inlined_call_operand.vmem [shape: f32[1,128], index: 6, kind: input, shape index: {}]
  %s7 = inlined_call_operand.vmem [shape: bf16[128,128], index: 7, kind: input, shape index: {}]
  %s8 = inlined_call_operand.vmem [shape: f32[1,128], index: 8, kind: input, shape index: {}]
  %s9 = inlined_call_operand.vmem [shape: f32[1,128], index: 9, kind: input, shape index: {}]
  %s10 = inlined_call_operand.hbm [shape: f32[8,128], index: 10, kind: output, shape index: {}]
  %s11 = sld [smem:[#allocation0]]
  $region50: #{mlp_stack_forward.1} parent=0
    _
  %s13 = ssub.s32 1, %s11
  %s14 = scalar_select 0, %s13, %s11
  $region1: #{mlp_stack_forward.1} parent=0
    #allocation2 [shape = 'u8[4096]{0}', space=vmem, size = 0x1000, scoped, tag = 'output window, operand 0, single buffered']
    #allocation3 [shape = 's32[1]{0}', space=sflag, size = 0x4, scoped, tag = 'scoped memory for mlp_stack_forward.1']
    %15 = vsyncpa [#allocation3], 0
    // Predicated region
    $region2: #{mlp_stack_forward.1} parent=1 // pred_check
      _
    $region3: #{mlp_stack_forward.1} parent=1 // pred_check_branch
      %17 = sbr.rel (0) target = $region5
    $region4: #{mlp_stack_forward.1} parent=1 // pred_region
      _
    $region5: #{mlp_stack_forward.1} parent=1 // pred_fallthru
      _
    // Predicated region
    $region6: #{mlp_stack_forward.1} parent=1 // pred_check
      _
    $region7: #{mlp_stack_forward.1} parent=1 // pred_check_branch
      %19 = sbr.rel (0) target = $region9
    $region8: #{mlp_stack_forward.1} parent=1 // pred_region
      _
    $region9: #{mlp_stack_forward.1} parent=1 // pred_fallthru
      _
    // Predicated region
    $region10: #{mlp_stack_forward.1} parent=1 // pred_check
      _
    $region11: #{mlp_stack_forward.1} parent=1 // pred_check_branch
      %21 = sbr.rel (0) target = $region13
    $region12: #{mlp_stack_forward.1} parent=1 // pred_region
      _
    $region13: #{mlp_stack_forward.1} parent=1 // pred_fallthru
      _
    // Predicated region
    $region14: #{mlp_stack_forward.1} parent=1 // pred_check
      _
    $region15: #{mlp_stack_forward.1} parent=1 // pred_check_branch
      %23 = sbr.rel (0) target = $region17
    $region16: #{mlp_stack_forward.1} parent=1 // pred_region
      _
    $region17: #{mlp_stack_forward.1} parent=1 // pred_fallthru
      _
    // Predicated region
    $region18: #{mlp_stack_forward.1} parent=1 // pred_check
      _
    $region19: #{mlp_stack_forward.1} parent=1 // pred_check_branch
      %25 = sbr.rel (0) target = $region21
    $region20: #{mlp_stack_forward.1} parent=1 // pred_region
      _
    $region21: #{mlp_stack_forward.1} parent=1 // pred_fallthru
      _
    // Predicated region
    $region22: #{mlp_stack_forward.1} parent=1 // pred_check
      _
    $region23: #{mlp_stack_forward.1} parent=1 // pred_check_branch
      %27 = sbr.rel (0) target = $region25
    $region24: #{mlp_stack_forward.1} parent=1 // pred_region
      _
    $region25: #{mlp_stack_forward.1} parent=1 // pred_fallthru
      _
    // Predicated region
    $region26: #{mlp_stack_forward.1} parent=1 // pred_check
      _
    $region27: #{mlp_stack_forward.1} parent=1 // pred_check_branch
      %29 = sbr.rel (0) target = $region29
    $region28: #{mlp_stack_forward.1} parent=1 // pred_region
      _
    $region29: #{mlp_stack_forward.1} parent=1 // pred_fallthru
      _
    // Predicated region
    $region30: #{mlp_stack_forward.1} parent=1 // pred_check
      _
    $region31: #{mlp_stack_forward.1} parent=1 // pred_check_branch
      %31 = sbr.rel (0) target = $region33
    $region32: #{mlp_stack_forward.1} parent=1 // pred_region
      _
    $region33: #{mlp_stack_forward.1} parent=1 // pred_fallthru
      _
    // Predicated region
    $region34: #{mlp_stack_forward.1} parent=1 // pred_check
      _
    $region35: #{mlp_stack_forward.1} parent=1 // pred_check_branch
      %33 = sbr.rel (0) target = $region37
    $region36: #{mlp_stack_forward.1} parent=1 // pred_region
      _
    $region37: #{mlp_stack_forward.1} parent=1 // pred_fallthru
      _
    // Predicated region
    $region38: #{mlp_stack_forward.1} parent=1 // pred_check
      _
    $region39: #{mlp_stack_forward.1} parent=1 // pred_check_branch
      %35 = sbr.rel (0) target = $region41
    $region40: #{mlp_stack_forward.1} parent=1 // pred_region
      _
    $region41: #{mlp_stack_forward.1} parent=1 // pred_fallthru
      _
    %v37 = vld [vmem:[%s0] sm:$0xff]
    %v38 = vld [vmem:[%s1] sm:$0xf]
    %v39 = vld [vmem:[%s1 + $0x4] sm:$0xf]
    %v40 = vld [vmem:[%s1 + $0x8] sm:$0xf]
    %v41 = vld [vmem:[%s1 + $0xc] sm:$0xf]
    %v42 = vld [vmem:[%s1 + $0x10] sm:$0xf]
    %v43 = vld [vmem:[%s1 + $0x14] sm:$0xf]
    %v44 = vld [vmem:[%s1 + $0x18] sm:$0xf]
    %v45 = vld [vmem:[%s1 + $0x1c] sm:$0xf]
    %v46 = vld [vmem:[%s1 + $0x20] sm:$0xf]
    %v47 = vld [vmem:[%s1 + $0x24] sm:$0xf]
    %v48 = vld [vmem:[%s1 + $0x28] sm:$0xf]
    %v49 = vld [vmem:[%s1 + $0x2c] sm:$0xf]
    %v50 = vld [vmem:[%s1 + $0x30] sm:$0xf]
    %v51 = vld [vmem:[%s1 + $0x34] sm:$0xf]
    %v52 = vld [vmem:[%s1 + $0x38] sm:$0xf]
    %v53 = vld [vmem:[%s1 + $0x3c] sm:$0xf]
    %v54 = vld [vmem:[%s2] sm:$0x1]
    %v55 = vld [vmem:[%s3] sm:$0x1]
    %v56 = vpack.c.bf16 %v37, %v37
    %v73 = vunpack.c.l.b16 %v38
    %v74 = vunpack.c.l.b16 %v39
    %v75 = vunpack.c.l.b16 %v40
    %v76 = vunpack.c.l.b16 %v41
    %v77 = vunpack.c.l.b16 %v42
    %v78 = vunpack.c.l.b16 %v43
    %v79 = vunpack.c.l.b16 %v44
    %v80 = vunpack.c.l.b16 %v45
    %v81 = vunpack.c.l.b16 %v46
    %v82 = vunpack.c.l.b16 %v47
    %v83 = vunpack.c.l.b16 %v48
    %v84 = vunpack.c.l.b16 %v49
    %v85 = vunpack.c.l.b16 %v50
    %v86 = vunpack.c.l.b16 %v51
    %v87 = vunpack.c.l.b16 %v52
    %v88 = vunpack.c.l.b16 %v53
    %v89 = vpack.c.b16 %v74, %v73
    %v90 = vpack.c.b16 %v76, %v75
    %v91 = vpack.c.b16 %v78, %v77
    %v92 = vpack.c.b16 %v80, %v79
    %v93 = vpack.c.b16 %v82, %v81
    %v94 = vpack.c.b16 %v84, %v83
    %v95 = vpack.c.b16 %v86, %v85
    %v96 = vpack.c.b16 %v88, %v87
    %105 = vmatprep.subr.bf16.mxu0 0
    %106 = vmatpush1.bf16.msra.mxu0 %v89
    %107 = vmatprep.subr.bf16.mxu0 0
    %108 = vmatpush1.bf16.msra.mxu0 %v90
    %109 = vmatprep.subr.bf16.mxu0 0
    %110 = vmatpush1.bf16.msra.mxu0 %v91
    %111 = vmatprep.subr.bf16.mxu0 0
    %112 = vmatpush1.bf16.msra.mxu0 %v92
    %113 = vmatprep.subr.bf16.mxu0 0
    %114 = vmatpush1.bf16.msra.mxu0 %v93
    %115 = vmatprep.subr.bf16.mxu0 0
    %116 = vmatpush1.bf16.msra.mxu0 %v94
    %117 = vmatprep.subr.bf16.mxu0 0
    %118 = vmatpush1.bf16.msra.mxu0 %v95
    %119 = vmatprep.subr.bf16.mxu0 0
    %120 = vmatpush1.bf16.msra.mxu0 %v96
    %121 = vmatprep.subr.bf16.mxu0 0
    %122 = vmatpush1.bf16.msra.mxu0 0
    %123 = vmatprep.subr.bf16.mxu0 0
    %124 = vmatpush1.bf16.msra.mxu0 0
    %125 = vmatprep.subr.bf16.mxu0 0
    %126 = vmatpush1.bf16.msra.mxu0 0
    %127 = vmatprep.subr.bf16.mxu0 0
    %128 = vmatpush1.bf16.msra.mxu0 0
    %129 = vmatprep.subr.bf16.mxu0 0
    %130 = vmatpush1.bf16.msra.mxu0 0
    %131 = vmatprep.subr.bf16.mxu0 0
    %132 = vmatpush1.bf16.msra.mxu0 0
    %133 = vmatprep.subr.bf16.mxu0 0
    %134 = vmatpush1.bf16.msra.mxu0 0
    %135 = vmatprep.subr.bf16.mxu0 0
    %136 = vmatpush1.bf16.msra.mxu0 0
    %137 = vmatprep.mubr.bf16.mxu0 0
    %138 = vmatmul.mubr.bf16.gmra.mrb[0].mxu0 %v56
    %v139 = vpop.f32.mrb[0].mxu0
    %v140 = vadd.f32 0.0, %v139
    %v141 = vpop.f32.mrb[0].mxu0
    %v142 = vpop.f32.mrb[0].mxu0
    %v143 = vpop.f32.mrb[0].mxu0
    %144 = vdwg.mxu0
    %v145 = vrot.slane %v140, 4
    %v146 = vadd.f32 %v140, %v145
    %v147 = vrot.slane %v146, 2
    %v148 = vadd.f32 %v146, %v147
    %v149 = vrot.slane %v148, 1
    %v150 = vadd.f32 %v148, %v149
    %v151 = vrcp.pop 8.0
    %v152 = vmul.f32 %v150, %v151
    %v153 = vsub.f32 %v140, %v152
    %v154 = vmul.f32 %v153, %v153
    %v155 = vrot.slane %v154, 4
    %v156 = vadd.f32 %v154, %v155
    %v157 = vrot.slane %v156, 2
    %v158 = vadd.f32 %v156, %v157
    %v159 = vrot.slane %v158, 1
    %v160 = vadd.f32 %v158, %v159
    %v161 = vmul.f32 %v160, %v151
    %v162 = vadd.f32 %v161, 1e-05
    %v163 = vrsqrt.pop %v162
    %v164 = vmul.f32 %v54, %v163
    %v166 = vlaneseq
    %v167 = vshrl.u32 %v166, 7
    %v168 = vsub.s32 0, %v167
    %v169 = vrot.slane %v164, %v168
    %v171 = vmul.f32 %v153, %v169
    %v173 = vlaneseq
    %v174 = vshrl.u32 %v173, 7
    %v175 = vsub.s32 0, %v174
    %v176 = vrot.slane %v55, %v175
    %v178 = vadd.f32 %v171, %v176
    %v179 = vxor.u32 %v178, 2147483648
    %v180 = vmul.f32 %v179, 1.442695
    %v181 = vpow.pop %v180
    %v182 = vadd.f32 %v181, 1.0
    %v183 = vrcp.pop %v182
    %v184 = vmul.f32 1.0, %v183
    %v185 = vmul.f32 %v178, %v184
    %v186 = vld [vmem:[%s4] sm:$0xf]
    %v187 = vld [vmem:[%s4 + $0x4] sm:$0xf]
    %v188 = vld [vmem:[%s4 + $0x8] sm:$0xf]
    %v189 = vld [vmem:[%s4 + $0xc] sm:$0xf]
    %v190 = vld [vmem:[%s4 + $0x10] sm:$0xf]
    %v191 = vld [vmem:[%s4 + $0x14] sm:$0xf]
    %v192 = vld [vmem:[%s4 + $0x18] sm:$0xf]
    %v193 = vld [vmem:[%s4 + $0x1c] sm:$0xf]
    %v194 = vld [vmem:[%s4 + $0x20] sm:$0xf]
    %v195 = vld [vmem:[%s4 + $0x24] sm:$0xf]
    %v196 = vld [vmem:[%s4 + $0x28] sm:$0xf]
    %v197 = vld [vmem:[%s4 + $0x2c] sm:$0xf]
    %v198 = vld [vmem:[%s4 + $0x30] sm:$0xf]
    %v199 = vld [vmem:[%s4 + $0x34] sm:$0xf]
    %v200 = vld [vmem:[%s4 + $0x38] sm:$0xf]
    %v201 = vld [vmem:[%s4 + $0x3c] sm:$0xf]
    %v202 = vld [vmem:[%s5] sm:$0x1]
    %v203 = vld [vmem:[%s6] sm:$0x1]
    %v204 = vpack.c.bf16 %v185, %v185
    %v221 = vunpack.c.l.b16 %v186
    %v222 = vunpack.c.l.b16 %v187
    %v223 = vunpack.c.l.b16 %v188
    %v224 = vunpack.c.l.b16 %v189
    %v225 = vunpack.c.l.b16 %v190
    %v226 = vunpack.c.l.b16 %v191
    %v227 = vunpack.c.l.b16 %v192
    %v228 = vunpack.c.l.b16 %v193
    %v229 = vunpack.c.l.b16 %v194
    %v230 = vunpack.c.l.b16 %v195
    %v231 = vunpack.c.l.b16 %v196
    %v232 = vunpack.c.l.b16 %v197
    %v233 = vunpack.c.l.b16 %v198
    %v234 = vunpack.c.l.b16 %v199
    %v235 = vunpack.c.l.b16 %v200
    %v236 = vunpack.c.l.b16 %v201
    %v237 = vpack.c.b16 %v222, %v221
    %v238 = vpack.c.b16 %v224, %v223
    %v239 = vpack.c.b16 %v226, %v225
    %v240 = vpack.c.b16 %v228, %v227
    %v241 = vpack.c.b16 %v230, %v229
    %v242 = vpack.c.b16 %v232, %v231
    %v243 = vpack.c.b16 %v234, %v233
    %v244 = vpack.c.b16 %v236, %v235
    %253 = vmatprep.subr.bf16.mxu0 0
    %254 = vmatpush1.bf16.msra.mxu0 %v237
    %255 = vmatprep.subr.bf16.mxu0 0
    %256 = vmatpush1.bf16.msra.mxu0 %v238
    %257 = vmatprep.subr.bf16.mxu0 0
    %258 = vmatpush1.bf16.msra.mxu0 %v239
    %259 = vmatprep.subr.bf16.mxu0 0
    %260 = vmatpush1.bf16.msra.mxu0 %v240
    %261 = vmatprep.subr.bf16.mxu0 0
    %262 = vmatpush1.bf16.msra.mxu0 %v241
    %263 = vmatprep.subr.bf16.mxu0 0
    %264 = vmatpush1.bf16.msra.mxu0 %v242
    %265 = vmatprep.subr.bf16.mxu0 0
    %266 = vmatpush1.bf16.msra.mxu0 %v243
    %267 = vmatprep.subr.bf16.mxu0 0
    %268 = vmatpush1.bf16.msra.mxu0 %v244
    %269 = vmatprep.subr.bf16.mxu0 0
    %270 = vmatpush1.bf16.msra.mxu0 0
    %271 = vmatprep.subr.bf16.mxu0 0
    %272 = vmatpush1.bf16.msra.mxu0 0
    %273 = vmatprep.subr.bf16.mxu0 0
    %274 = vmatpush1.bf16.msra.mxu0 0
    %275 = vmatprep.subr.bf16.mxu0 0
    %276 = vmatpush1.bf16.msra.mxu0 0
    %277 = vmatprep.subr.bf16.mxu0 0
    %278 = vmatpush1.bf16.msra.mxu0 0
    %279 = vmatprep.subr.bf16.mxu0 0
    %280 = vmatpush1.bf16.msra.mxu0 0
    %281 = vmatprep.subr.bf16.mxu0 0
    %282 = vmatpush1.bf16.msra.mxu0 0
    %283 = vmatprep.subr.bf16.mxu0 0
    %284 = vmatpush1.bf16.msra.mxu0 0
    %285 = vmatprep.mubr.bf16.mxu0 0
    %286 = vmatmul.mubr.bf16.gmra.mrb[0].mxu0 %v204
    %v287 = vpop.f32.mrb[0].mxu0
    %v288 = vadd.f32 0.0, %v287
    %v289 = vpop.f32.mrb[0].mxu0
    %v290 = vpop.f32.mrb[0].mxu0
    %v291 = vpop.f32.mrb[0].mxu0
    %292 = vdwg.mxu0
    %v293 = vrot.slane %v288, 4
    %v294 = vadd.f32 %v288, %v293
    %v295 = vrot.slane %v294, 2
    %v296 = vadd.f32 %v294, %v295
    %v297 = vrot.slane %v296, 1
    %v298 = vadd.f32 %v296, %v297
    %v299 = vmul.f32 %v298, %v151
    %v300 = vsub.f32 %v288, %v299
    %v301 = vmul.f32 %v300, %v300
    %v302 = vrot.slane %v301, 4
    %v303 = vadd.f32 %v301, %v302
    %v304 = vrot.slane %v303, 2
    %v305 = vadd.f32 %v303, %v304
    %v306 = vrot.slane %v305, 1
    %v307 = vadd.f32 %v305, %v306
    %v308 = vmul.f32 %v307, %v151
    %v309 = vadd.f32 %v308, 1e-05
    %v310 = vrsqrt.pop %v309
    %v311 = vmul.f32 %v202, %v310
    %v313 = vlaneseq
    %v314 = vshrl.u32 %v313, 7
    %v315 = vsub.s32 0, %v314
    %v316 = vrot.slane %v311, %v315
    %v318 = vmul.f32 %v300, %v316
    %v320 = vlaneseq
    %v321 = vshrl.u32 %v320, 7
    %v322 = vsub.s32 0, %v321
    %v323 = vrot.slane %v203, %v322
    %v325 = vadd.f32 %v318, %v323
    %v326 = vxor.u32 %v325, 2147483648
    %v327 = vmul.f32 %v326, 1.442695
    %v328 = vpow.pop %v327
    %v329 = vadd.f32 %v328, 1.0
    %v330 = vrcp.pop %v329
    %v331 = vmul.f32 1.0, %v330
    %v332 = vmul.f32 %v325, %v331
    %v333 = vld [vmem:[%s7] sm:$0xf]
    %v334 = vld [vmem:[%s7 + $0x4] sm:$0xf]
    %v335 = vld [vmem:[%s7 + $0x8] sm:$0xf]
    %v336 = vld [vmem:[%s7 + $0xc] sm:$0xf]
    %v337 = vld [vmem:[%s7 + $0x10] sm:$0xf]
    %v338 = vld [vmem:[%s7 + $0x14] sm:$0xf]
    %v339 = vld [vmem:[%s7 + $0x18] sm:$0xf]
    %v340 = vld [vmem:[%s7 + $0x1c] sm:$0xf]
    %v341 = vld [vmem:[%s7 + $0x20] sm:$0xf]
    %v342 = vld [vmem:[%s7 + $0x24] sm:$0xf]
    %v343 = vld [vmem:[%s7 + $0x28] sm:$0xf]
    %v344 = vld [vmem:[%s7 + $0x2c] sm:$0xf]
    %v345 = vld [vmem:[%s7 + $0x30] sm:$0xf]
    %v346 = vld [vmem:[%s7 + $0x34] sm:$0xf]
    %v347 = vld [vmem:[%s7 + $0x38] sm:$0xf]
    %v348 = vld [vmem:[%s7 + $0x3c] sm:$0xf]
    %v349 = vld [vmem:[%s8] sm:$0x1]
    %v350 = vld [vmem:[%s9] sm:$0x1]
    %v351 = vpack.c.bf16 %v332, %v332
    %v368 = vunpack.c.l.b16 %v333
    %v369 = vunpack.c.l.b16 %v334
    %v370 = vunpack.c.l.b16 %v335
    %v371 = vunpack.c.l.b16 %v336
    %v372 = vunpack.c.l.b16 %v337
    %v373 = vunpack.c.l.b16 %v338
    %v374 = vunpack.c.l.b16 %v339
    %v375 = vunpack.c.l.b16 %v340
    %v376 = vunpack.c.l.b16 %v341
    %v377 = vunpack.c.l.b16 %v342
    %v378 = vunpack.c.l.b16 %v343
    %v379 = vunpack.c.l.b16 %v344
    %v380 = vunpack.c.l.b16 %v345
    %v381 = vunpack.c.l.b16 %v346
    %v382 = vunpack.c.l.b16 %v347
    %v383 = vunpack.c.l.b16 %v348
    %v384 = vpack.c.b16 %v369, %v368
    %v385 = vpack.c.b16 %v371, %v370
    %v386 = vpack.c.b16 %v373, %v372
    %v387 = vpack.c.b16 %v375, %v374
    %v388 = vpack.c.b16 %v377, %v376
    %v389 = vpack.c.b16 %v379, %v378
    %v390 = vpack.c.b16 %v381, %v380
    %v391 = vpack.c.b16 %v383, %v382
    %400 = vmatprep.subr.bf16.mxu0 0
    %401 = vmatpush1.bf16.msra.mxu0 %v384
    %402 = vmatprep.subr.bf16.mxu0 0
    %403 = vmatpush1.bf16.msra.mxu0 %v385
    %404 = vmatprep.subr.bf16.mxu0 0
    %405 = vmatpush1.bf16.msra.mxu0 %v386
    %406 = vmatprep.subr.bf16.mxu0 0
    %407 = vmatpush1.bf16.msra.mxu0 %v387
    %408 = vmatprep.subr.bf16.mxu0 0
    %409 = vmatpush1.bf16.msra.mxu0 %v388
    %410 = vmatprep.subr.bf16.mxu0 0
    %411 = vmatpush1.bf16.msra.mxu0 %v389
    %412 = vmatprep.subr.bf16.mxu0 0
    %413 = vmatpush1.bf16.msra.mxu0 %v390
    %414 = vmatprep.subr.bf16.mxu0 0
    %415 = vmatpush1.bf16.msra.mxu0 %v391
    %416 = vmatprep.subr.bf16.mxu0 0
    %417 = vmatpush1.bf16.msra.mxu0 0
    %418 = vmatprep.subr.bf16.mxu0 0
    %419 = vmatpush1.bf16.msra.mxu0 0
    %420 = vmatprep.subr.bf16.mxu0 0
    %421 = vmatpush1.bf16.msra.mxu0 0
    %422 = vmatprep.subr.bf16.mxu0 0
    %423 = vmatpush1.bf16.msra.mxu0 0
    %424 = vmatprep.subr.bf16.mxu0 0
    %425 = vmatpush1.bf16.msra.mxu0 0
    %426 = vmatprep.subr.bf16.mxu0 0
    %427 = vmatpush1.bf16.msra.mxu0 0
    %428 = vmatprep.subr.bf16.mxu0 0
    %429 = vmatpush1.bf16.msra.mxu0 0
    %430 = vmatprep.subr.bf16.mxu0 0
    %431 = vmatpush1.bf16.msra.mxu0 0
    %432 = vmatprep.mubr.bf16.mxu0 0
    %433 = vmatmul.mubr.bf16.gmra.mrb[0].mxu0 %v351
    %v434 = vpop.f32.mrb[0].mxu0
    %v435 = vadd.f32 0.0, %v434
    %v436 = vpop.f32.mrb[0].mxu0
    %v437 = vpop.f32.mrb[0].mxu0
    %v438 = vpop.f32.mrb[0].mxu0
    %439 = vdwg.mxu0
    %v440 = vrot.slane %v435, 4
    %v441 = vadd.f32 %v435, %v440
    %v442 = vrot.slane %v441, 2
    %v443 = vadd.f32 %v441, %v442
    %v444 = vrot.slane %v443, 1
    %v445 = vadd.f32 %v443, %v444
    %v446 = vmul.f32 %v445, %v151
    %v447 = vsub.f32 %v435, %v446
    %v448 = vmul.f32 %v447, %v447
    %v449 = vrot.slane %v448, 4
    %v450 = vadd.f32 %v448, %v449
    %v451 = vrot.slane %v450, 2
    %v452 = vadd.f32 %v450, %v451
    %v453 = vrot.slane %v452, 1
    %v454 = vadd.f32 %v452, %v453
    %v455 = vmul.f32 %v454, %v151
    %v456 = vadd.f32 %v455, 1e-05
    %v457 = vrsqrt.pop %v456
    %v458 = vmul.f32 %v349, %v457
    %v460 = vlaneseq
    %v461 = vshrl.u32 %v460, 7
    %v462 = vsub.s32 0, %v461
    %v463 = vrot.slane %v458, %v462
    %v465 = vmul.f32 %v447, %v463
    %v467 = vlaneseq
    %v468 = vshrl.u32 %v467, 7
    %v469 = vsub.s32 0, %v468
    %v470 = vrot.slane %v350, %v469
    %v472 = vadd.f32 %v465, %v470
    %v473 = vxor.u32 %v472, 2147483648
    %v474 = vmul.f32 %v473, 1.442695
    %v475 = vpow.pop %v474
    %v476 = vadd.f32 %v475, 1.0
    %v477 = vrcp.pop %v476
    %v478 = vmul.f32 1.0, %v477
    %v479 = vmul.f32 %v472, %v478
    %480 = vst [vmem:[#allocation2] sm:$0xff] %v479
    // Predicated region
    $region42: #{mlp_stack_forward.1} parent=1 // pred_check
      _
    $region43: #{mlp_stack_forward.1} parent=1 // pred_check_branch
      %482 = sbr.rel (0) target = $region45
    $region44: #{mlp_stack_forward.1} parent=1 // pred_region
      %s484 = ssub.s32 128, 128
      %485 = vsyncadd [#allocation3], %s484
      %s487 = sshll.u32 [#allocation2], 4
      %s488 = int_to_ptr.vmem [resolvable:$true] %s487
      %490 = dma.vmem_to_hbm [thread:$0]  %s488, 128, %s10, [#allocation3]
    $region45: #{mlp_stack_forward.1} parent=1 // pred_fallthru
      _
    // Predicated region
    $region46: #{mlp_stack_forward.1} parent=1 // pred_check
      _
    $region47: #{mlp_stack_forward.1} parent=1 // pred_check_branch
      %492 = sbr.rel (0) target = $region49
    $region48: #{mlp_stack_forward.1} parent=1 // pred_region
      %493 = dma.done [#allocation3], 128
    $region49: #{mlp_stack_forward.1} parent=1 // pred_fallthru
      _
    %494 = vsyncpa [#allocation3], 1

</llo_original>
